<compile_context>
chip_gen: v7x
topology: tpu7x:2x2x1
jax: 0.10.0
libtpu: 0.0.40
codegen_flags: <defaults>
</compile_context>

<pallas_src>
import math
import functools

import jax
import jax.numpy as jnp
import numpy as np
from jax.experimental import pallas as pl
from jax.experimental.pallas import tpu as pltpu


_HALF_LN_2PI = 0.5 * math.log(2.0 * math.pi)
_SHIFT = 6  # argument shift for the Stirling series (valid for x >= 1)


def _harmonic_numerator_coeffs(shift):
    """Coefficients (highest degree first) of N(x) = sum_k prod_{j!=k}(x+j) so
    that sum_{k=0..shift-1} 1/(x+k) == N(x) / prod_{j=0..shift-1}(x+j)."""
    num = np.zeros(shift, dtype=np.float64)
    for k in range(shift):
        roots = [-j for j in range(shift) if j != k]
        num = num + np.poly(roots)
    return tuple(float(c) for c in num)


_HARMONIC_NUM = _harmonic_numerator_coeffs(_SHIFT)


def _fast_recip(x):
    """1/x via approx EUP vrcp + one Newton step (~1e-7 relative error)."""
    r = pl.reciprocal(x, approx=True)
    return r * (2.0 - x * r)


def _lgamma_digamma(x):
    """Fused (lgamma(x), digamma(x)) for x >= 1 (guaranteed: alpha = exp(.)+1).

    Shift x -> y = x + 6 and use the asymptotic series at y >= 7:
      lgamma(x)  = lgamma(y)  - log(x (x+1) ... (x+5))
      digamma(x) = digamma(y) - sum_{j<6} 1/(x+j)   [one rational N(x)/P(x)]
    Only 2 logs + 2 (approx) reciprocals per element hit the EUP; the rest is
    VALU FMAs.  Accurate to ~1e-6 in f32 for the argument range here.
    """
    p = x
    for j in range(1, _SHIFT):
        p = p * (x + float(j))            # P(x) = x(x+1)...(x+5)
    y = x + float(_SHIFT)
    w = _fast_recip(y)
    w2 = w * w
    ln_y = jnp.log(y)
    ln_p = jnp.log(p)
    inv_p = _fast_recip(p)

    # lgamma(y) = (y-0.5) ln y - y + 0.5 ln(2pi) + 1/(12y) - 1/(360y^3) + 1/(1260y^5)
    lg_tail = w * (1.0 / 12.0 - w2 * (1.0 / 360.0 - w2 * (1.0 / 1260.0)))
    lgamma_x = (y - 0.5) * ln_y - y + _HALF_LN_2PI + lg_tail - ln_p

    # digamma(y) = ln y - 1/(2y) - 1/(12y^2) + 1/(120y^4) - 1/(252y^6)
    dg_tail = w2 * (1.0 / 12.0 - w2 * (1.0 / 120.0 - w2 * (1.0 / 252.0)))
    n = _HARMONIC_NUM[0]
    for c in _HARMONIC_NUM[1:]:
        n = n * x + c                     # Horner for N(x)
    digamma_x = ln_y - 0.5 * w - dg_tail - n * inv_p
    return lgamma_x, digamma_x


# ----------------------------------------------------------------------------
# Pallas kernel: one block = all C classes (sublanes) x TILE batch lanes,
# strip-mined into <=512-lane chunks to keep the vreg live set small.
# ----------------------------------------------------------------------------
def _edl_kernel(coef_ref, target_ref, logits_ref,
                loss_ref, ev_ref, u_ref, prob_ref,
                *, num_classes, kl_elim, ln_b_uni, chunk):
    C = num_classes
    tile = logits_ref.shape[1]
    n_chunks = tile // chunk

    def process(j):
        logits = logits_ref[:, pl.ds(j, chunk)].astype(jnp.float32)   # (C, chunk)
        tgt = target_ref[:, pl.ds(j, chunk)]                          # (1, chunk)

        # one-hot along the class (sublane) axis
        class_ids = jax.lax.broadcasted_iota(jnp.int32, (C, chunk), 0)
        is_tgt = class_ids == tgt                                     # (C, chunk)
        onehot = is_tgt.astype(jnp.float32)

        def csum(x):  # class-axis reduction as C-1 unrolled sublane-row adds
            s = x[0:1, :]
            for c in range(1, C):
                s = s + x[c:c + 1, :]
            return s                                                  # (1, chunk)

        # evidence / alpha / S / u / prob  (== get_edl_vars with exp_evidence)
        # (logits * 0.1 vs logits / 10: <=1 ulp pre-exp; negligible)
        evidence = jnp.exp(jnp.clip(logits * 0.1, -10.0, 10.0))
        alpha = evidence + 1.0
        S = csum(alpha)
        inv_s = _fast_recip(S)                                        # reused
        u = float(C) * inv_s
        prob = alpha * inv_s                                          # == m

        # Bayes-risk terms sharing sum(alpha^2) and inv_s:
        #   A = sum((onehot - m)^2)              = 1 - 2*alpha[tgt]/S + sum(alpha^2)/S^2
        #   B = sum(alpha*(S-alpha))/(S^2 (S+1)) = (1 - sum(alpha^2)/S^2) / (S+1)
        sum_a2 = csum(alpha * alpha)
        a_tgt = csum(onehot * alpha)
        sa2_over_s2 = sum_a2 * (inv_s * inv_s)
        A = 1.0 - 2.0 * a_tgt * inv_s + sa2_over_s2
        B = (1.0 - sa2_over_s2) * _fast_recip(S + 1.0)
        loss = A + B

        if not kl_elim:
            # KL(Dir(alp) || Dir(1)) with alp = (alpha - 1)*(1 - onehot) + 1
            alp = jnp.where(is_tgt, 1.0, alpha)
            S_alp = csum(alp)
            lg_a, dg_a = _lgamma_digamma(alp)
            lg_s, dg_s = _lgamma_digamma(S_alp)
            lnB = lg_s - csum(lg_a)
            kl = csum((alp - 1.0) * (dg_a - dg_s)) + lnB + ln_b_uni
            loss = loss + coef_ref[0] * kl

        loss_ref[:, pl.ds(j, chunk)] = loss
        ev_ref[:, pl.ds(j, chunk)] = evidence.astype(ev_ref.dtype)
        u_ref[:, pl.ds(j, chunk)] = u
        prob_ref[:, pl.ds(j, chunk)] = prob.astype(prob_ref.dtype)

    if n_chunks == 1:
        process(0)
    else:
        def body(i, carry):
            process(pl.multiple_of(i * chunk, chunk))
            return carry
        jax.lax.fori_loop(0, n_chunks, body, 0)


# ----------------------------------------------------------------------------
# Wrapper
# ----------------------------------------------------------------------------
def _round_up(x, m):
    return (x + m - 1) // m * m


def _device_kind():
    try:
        return jax.devices()[0].device_kind.lower()
    except Exception:
        return ""


def _pick_tile_and_chunk(n, max_tile_lanes):
    """Chip-gated lane-tile selection + inner strip-mine chunk."""
    kind = _device_kind()
    if max_tile_lanes is None:
        if "v7" in kind or "7x" in kind:
            max_tile_lanes = 32768        # ~3.2 TB/s HBM: amortize step overhead
        elif "v6" in kind:
            max_tile_lanes = 16384
        else:                             # v5e / older / unknown
            max_tile_lanes = 8192
    n128 = _round_up(max(int(n), 1), 128)
    tile = min(_round_up(int(max_tile_lanes), 128), n128)
    # Multi-TensorCore chips only: keep >= 2 grid steps so ("parallel",) can
    # shard the grid across cores.  Single-TC chips (v5e/v6e) skip this.
    multi_core = ("v7" in kind or "7x" in kind or "v4" in kind or "v5p" in kind)
    if multi_core and tile == n128 and tile % 256 == 0:
        tile //= 2
    chunk = 128
    for c in (512, 256, 128):
        if tile % c == 0:
            chunk = c
            break
    return tile, min(chunk, tile)


@functools.partial(
    jax.jit,
    static_argnames=("num_classes", "kl_elimination", "class_major",
                     "max_tile_lanes", "aux_dtype"))
def _edl_loss_impl(logits, target, coef, *, num_classes, kl_elimination,
                   class_major, max_tile_lanes, aux_dtype):
    if class_major:
        C, N = logits.shape
        logits_cm = logits                      # already (C, N): zero relayout
    else:
        N, C = logits.shape
        logits_cm = logits.T                    # keep original dtype (bf16 stays bf16)
    assert C == num_classes
    target_cm = target.astype(jnp.int32).reshape(1, N)

    tile, chunk = _pick_tile_and_chunk(N, max_tile_lanes)
    grid = (pl.cdiv(N, tile),)                  # ragged tail: Pallas partial blocks

    ln_b_uni = -math.lgamma(float(num_classes))
    kernel = functools.partial(_edl_kernel, num_classes=num_classes,
                               kl_elim=kl_elimination, ln_b_uni=ln_b_uni,
                               chunk=chunk)

    spec_c = pl.BlockSpec((C, tile), lambda i: (0, i))
    spec_1 = pl.BlockSpec((1, tile), lambda i: (0, i))

    # Advisory cost estimate so XLA can overlap neighbors around the call.
    in_item = jnp.dtype(logits.dtype).itemsize
    aux_item = jnp.dtype(aux_dtype).itemsize
    bytes_accessed = N * (C * in_item + 4 + 2 * C * aux_item + 2 * 4)
    if kl_elimination:
        flops, transcendentals = N * (C * 12 + 20), N * (C + 2)
    else:
        flops, transcendentals = N * (C * 55 + 45), N * (C * 5 + 7)
    cost = pl.CostEstimate(flops=int(flops),
                           transcendentals=int(transcendentals),
                           bytes_accessed=int(bytes_accessed))

    loss_t, ev_t, u_t, prob_t = pl.pallas_call(
        kernel,
        grid=grid,
        in_specs=[pl.BlockSpec(memory_space=pltpu.MemorySpace.SMEM),  # coef (1,)
                  spec_1,                                             # target (1, N)
                  spec_c],                                            # logits (C, N)
        out_specs=(spec_1, spec_c, spec_1, spec_c),
        out_shape=(
            jax.ShapeDtypeStruct((1, N), jnp.float32),   # loss
            jax.ShapeDtypeStruct((C, N), aux_dtype),     # evidence
            jax.ShapeDtypeStruct((1, N), jnp.float32),   # uncertainty
            jax.ShapeDtypeStruct((C, N), aux_dtype),     # prob
        ),
        compiler_params=pltpu.CompilerParams(dimension_semantics=("parallel",)),
        cost_estimate=cost,
    )(coef, target_cm, logits_cm)

    loss = loss_t[0]                                      # (N,) == .squeeze(dim=1)
    if class_major:
        # Zero-relayout path: consumer accepts class-major aux outputs.
        return loss, {"evidence": ev_t, "uncertainty": u_t, "prob": prob_t}
    # PyTorch-shaped path: transposes fused by XLA under this jit.
    return loss, {"evidence": ev_t.T, "uncertainty": u_t.T, "prob": prob_t.T}


def edl_loss(logits, target, global_step, annealing_step, *,
             num_classes=2, kl_elimination=False, class_major=False,
             max_tile_lanes=None, aux_dtype=jnp.float32):
    """EDLLoss.forward.

    logits: (N, C), or (C, N) when class_major=True (no wrapper relayout).
    Returns (loss (N,), {'evidence', 'uncertainty', 'prob'}); aux outputs are
    (N, C)/(N, 1) by default, (C, N)/(1, N) when class_major=True.
    global_step/annealing_step must be host scalars (annealing coef -> SMEM).
    """
    coef = jnp.full((1,), min(1.0, float(global_step) / float(annealing_step)),
                    dtype=jnp.float32)
    return _edl_loss_impl(logits, target, coef,
                          num_classes=num_classes,
                          kl_elimination=kl_elimination,
                          class_major=class_major,
                          max_tile_lanes=max_tile_lanes,
                          aux_dtype=aux_dtype)


# ----------------------------------------------------------------------------
# Pure-JAX reference (mirrors the PyTorch module) for a sanity check.
# ----------------------------------------------------------------------------
def edl_loss_ref(logits, target, global_step, annealing_step, *,
                 num_classes=2, kl_elimination=False):
    from jax.scipy.special import gammaln, digamma
    logits = logits.astype(jnp.float32)
    onehot = jax.nn.one_hot(target, num_classes, dtype=jnp.float32)
    evidence = jnp.exp(jnp.clip(logits / 10.0, -10.0, 10.0))
    alpha = evidence + 1.0
    S = jnp.sum(alpha, axis=1, keepdims=True)
    u = num_classes / S
    prob = alpha / S
    E = alpha - 1.0
    m = alpha / S
    A = jnp.sum((onehot - m) ** 2, axis=1, keepdims=True)
    B = jnp.sum(alpha * (S - alpha) / (S * S * (S + 1.0)), axis=1, keepdims=True)
    coef = min(1.0, float(global_step) / float(annealing_step))
    alp = E * (1.0 - onehot) + 1.0
    S_alp = jnp.sum(alp, axis=1, keepdims=True)
    lnB = gammaln(S_alp) - jnp.sum(gammaln(alp), axis=1, keepdims=True)
    lnB_uni = -gammaln(float(num_classes))
    kl = (jnp.sum((alp - 1.0) * (digamma(alp) - digamma(S_alp)),
                  axis=1, keepdims=True) + lnB + lnB_uni)
    loss = A + B if kl_elimination else A + B + coef * kl
    return loss[:, 0], evidence, u, prob


if __name__ == "__main__":
    key = jax.random.PRNGKey(0)
    k_logit, k_tgt = jax.random.split(key)

    N, C = 64, 4                      # small batch of 64 samples, 4 classes
    logits = jax.random.normal(k_logit, (N, C), dtype=jnp.float32) * 5.0
    target = jax.random.randint(k_tgt, (N,), 0, C)
    global_step, annealing_step = 10, 100

    # Default PyTorch-shaped path.
    loss, aux = edl_loss(logits, target, global_step, annealing_step,
                         num_classes=C, kl_elimination=False)
    jax.block_until_ready(loss)
    jax.block_until_ready(aux["evidence"])
    jax.block_until_ready(aux["uncertainty"])
    jax.block_until_ready(aux["prob"])

    # Sanity check against a pure-JAX reference of the PyTorch semantics.
    loss_r, ev_r, u_r, prob_r = edl_loss_ref(
        logits, target, global_step, annealing_step,
        num_classes=C, kl_elimination=False)
    np.testing.assert_allclose(np.asarray(loss), np.asarray(loss_r),
                               rtol=2e-3, atol=2e-3)
    np.testing.assert_allclose(np.asarray(aux["evidence"]), np.asarray(ev_r),
                               rtol=1e-4, atol=1e-4)
    np.testing.assert_allclose(np.asarray(aux["uncertainty"]), np.asarray(u_r),
                               rtol=1e-4, atol=1e-4)
    np.testing.assert_allclose(np.asarray(aux["prob"]), np.asarray(prob_r),
                               rtol=1e-4, atol=1e-4)

    # Class-major fast path (zero wrapper relayouts).
    loss_cm, aux_cm = edl_loss(logits.T, target, global_step, annealing_step,
                               num_classes=C, kl_elimination=False,
                               class_major=True)
    jax.block_until_ready(loss_cm)
    np.testing.assert_allclose(np.asarray(loss_cm), np.asarray(loss_r),
                               rtol=2e-3, atol=2e-3)
    np.testing.assert_allclose(np.asarray(aux_cm["prob"]), np.asarray(prob_r).T,
                               rtol=1e-4, atol=1e-4)

    print("KERNEL_OK")
</pallas_src>

<mosaic_0001>
module attributes {stable_mosaic.version = 11 : i64} {
  func.func @_edl_kernel(%arg0: i32, %arg1: memref<1xf32, #tpu.memory_space<smem>>, %arg2: memref<1x128xi32, #tpu.memory_space<vmem>>, %arg3: memref<4x128xf32, #tpu.memory_space<vmem>>, %arg4: memref<1x128xf32, #tpu.memory_space<vmem>>, %arg5: memref<4x128xf32, #tpu.memory_space<vmem>>, %arg6: memref<1x128xf32, #tpu.memory_space<vmem>>, %arg7: memref<4x128xf32, #tpu.memory_space<vmem>>) attributes {dimension_semantics = [#tpu.dimension_semantics<parallel>], iteration_bounds = array<i64: 1>, scalar_prefetch = 0 : i64, scratch_operands = 0 : i64, tpu.core_type = #tpu.core_type<tc>, window_params = [{transform_indices = @transform_0, window_bounds = array<i64: 1>}, {transform_indices = @transform_1, window_bounds = array<i64: 1, 128>}, {transform_indices = @transform_2, window_bounds = array<i64: 4, 128>}, {transform_indices = @transform_3, window_bounds = array<i64: 1, 128>}, {transform_indices = @transform_4, window_bounds = array<i64: 4, 128>}, {transform_indices = @transform_5, window_bounds = array<i64: 1, 128>}, {transform_indices = @transform_6, window_bounds = array<i64: 4, 128>}]} {
    %c0 = arith.constant 0 : index
    %c0_0 = arith.constant 0 : index
    %0 = vector.load %arg3[%c0, %c0_0] : memref<4x128xf32, #tpu.memory_space<vmem>>, vector<4x128xf32>
    %c0_1 = arith.constant 0 : index
    %c0_2 = arith.constant 0 : index
    %1 = vector.load %arg2[%c0_1, %c0_2] : memref<1x128xi32, #tpu.memory_space<vmem>>, vector<1x128xi32>
    %2 = tpu.iota {dimensions = array<i32: 0>} : vector<4x128xi32>
    %3 = vector.broadcast %1 : vector<1x128xi32> to vector<4x128xi32>
    %4 = arith.cmpi eq, %2, %3 : vector<4x128xi32>
    %5 = arith.extui %4 : vector<4x128xi1> to vector<4x128xi32>
    %6 = arith.sitofp %5 : vector<4x128xi32> to vector<4x128xf32>
    %cst = arith.constant 1.000000e-01 : f32
    %7 = vector.broadcast %cst : f32 to vector<4x128xf32>
    %8 = arith.mulf %0, %7 : vector<4x128xf32>
    %cst_3 = arith.constant -1.000000e+01 : f32
    %cst_4 = arith.constant 1.000000e+01 : f32
    %9 = vector.broadcast %cst_3 : f32 to vector<4x128xf32>
    %10 = arith.maximumf %9, %8 : vector<4x128xf32>
    %11 = vector.broadcast %cst_4 : f32 to vector<4x128xf32>
    %12 = arith.minimumf %11, %10 : vector<4x128xf32>
    %13 = math.exp %12 : vector<4x128xf32>
    %cst_5 = arith.constant 1.000000e+00 : f32
    %14 = vector.broadcast %cst_5 : f32 to vector<4x128xf32>
    %15 = arith.addf %13, %14 : vector<4x128xf32>
    %16 = vector.extract_strided_slice %15 {offsets = [0, 0], sizes = [1, 128], strides = [1, 1]} : vector<4x128xf32> to vector<1x128xf32>
    %17 = vector.extract_strided_slice %15 {offsets = [1, 0], sizes = [1, 128], strides = [1, 1]} : vector<4x128xf32> to vector<1x128xf32>
    %18 = arith.addf %16, %17 : vector<1x128xf32>
    %19 = vector.extract_strided_slice %15 {offsets = [2, 0], sizes = [1, 128], strides = [1, 1]} : vector<4x128xf32> to vector<1x128xf32>
    %20 = arith.addf %18, %19 : vector<1x128xf32>
    %21 = vector.extract_strided_slice %15 {offsets = [3, 0], sizes = [1, 128], strides = [1, 1]} : vector<4x128xf32> to vector<1x128xf32>
    %22 = arith.addf %20, %21 : vector<1x128xf32>
    %23 = tpu.reciprocal %22 {approx = true} : vector<1x128xf32> -> vector<1x128xf32>
    %24 = arith.mulf %22, %23 : vector<1x128xf32>
    %cst_6 = arith.constant 2.000000e+00 : f32
    %25 = vector.broadcast %cst_6 : f32 to vector<1x128xf32>
    %26 = arith.subf %25, %24 : vector<1x128xf32>
    %27 = arith.mulf %23, %26 : vector<1x128xf32>
    %cst_7 = arith.constant 4.000000e+00 : f32
    %28 = vector.broadcast %cst_7 : f32 to vector<1x128xf32>
    %29 = arith.mulf %28, %27 : vector<1x128xf32>
    %30 = vector.broadcast %27 : vector<1x128xf32> to vector<4x128xf32>
    %31 = arith.mulf %15, %30 : vector<4x128xf32>
    %32 = arith.mulf %15, %15 : vector<4x128xf32>
    %33 = vector.extract_strided_slice %32 {offsets = [0, 0], sizes = [1, 128], strides = [1, 1]} : vector<4x128xf32> to vector<1x128xf32>
    %34 = vector.extract_strided_slice %32 {offsets = [1, 0], sizes = [1, 128], strides = [1, 1]} : vector<4x128xf32> to vector<1x128xf32>
    %35 = arith.addf %33, %34 : vector<1x128xf32>
    %36 = vector.extract_strided_slice %32 {offsets = [2, 0], sizes = [1, 128], strides = [1, 1]} : vector<4x128xf32> to vector<1x128xf32>
    %37 = arith.addf %35, %36 : vector<1x128xf32>
    %38 = vector.extract_strided_slice %32 {offsets = [3, 0], sizes = [1, 128], strides = [1, 1]} : vector<4x128xf32> to vector<1x128xf32>
    %39 = arith.addf %37, %38 : vector<1x128xf32>
    %40 = arith.mulf %6, %15 : vector<4x128xf32>
    %41 = vector.extract_strided_slice %40 {offsets = [0, 0], sizes = [1, 128], strides = [1, 1]} : vector<4x128xf32> to vector<1x128xf32>
    %42 = vector.extract_strided_slice %40 {offsets = [1, 0], sizes = [1, 128], strides = [1, 1]} : vector<4x128xf32> to vector<1x128xf32>
    %43 = arith.addf %41, %42 : vector<1x128xf32>
    %44 = vector.extract_strided_slice %40 {offsets = [2, 0], sizes = [1, 128], strides = [1, 1]} : vector<4x128xf32> to vector<1x128xf32>
    %45 = arith.addf %43, %44 : vector<1x128xf32>
    %46 = vector.extract_strided_slice %40 {offsets = [3, 0], sizes = [1, 128], strides = [1, 1]} : vector<4x128xf32> to vector<1x128xf32>
    %47 = arith.addf %45, %46 : vector<1x128xf32>
    %48 = arith.mulf %27, %27 : vector<1x128xf32>
    %49 = arith.mulf %39, %48 : vector<1x128xf32>
    %cst_8 = arith.constant 2.000000e+00 : f32
    %50 = vector.broadcast %cst_8 : f32 to vector<1x128xf32>
    %51 = arith.mulf %50, %47 : vector<1x128xf32>
    %52 = arith.mulf %51, %27 : vector<1x128xf32>
    %cst_9 = arith.constant 1.000000e+00 : f32
    %53 = vector.broadcast %cst_9 : f32 to vector<1x128xf32>
    %54 = arith.subf %53, %52 : vector<1x128xf32>
    %55 = arith.addf %54, %49 : vector<1x128xf32>
    %cst_10 = arith.constant 1.000000e+00 : f32
    %56 = vector.broadcast %cst_10 : f32 to vector<1x128xf32>
    %57 = arith.subf %56, %49 : vector<1x128xf32>
    %cst_11 = arith.constant 1.000000e+00 : f32
    %58 = vector.broadcast %cst_11 : f32 to vector<1x128xf32>
    %59 = arith.addf %22, %58 : vector<1x128xf32>
    %60 = tpu.reciprocal %59 {approx = true} : vector<1x128xf32> -> vector<1x128xf32>
    %61 = arith.mulf %59, %60 : vector<1x128xf32>
    %cst_12 = arith.constant 2.000000e+00 : f32
    %62 = vector.broadcast %cst_12 : f32 to vector<1x128xf32>
    %63 = arith.subf %62, %61 : vector<1x128xf32>
    %64 = arith.mulf %60, %63 : vector<1x128xf32>
    %65 = arith.mulf %57, %64 : vector<1x128xf32>
    %66 = arith.addf %55, %65 : vector<1x128xf32>
    %cst_13 = arith.constant 1.000000e+00 : f32
    %67 = vector.broadcast %cst_13 : f32 to vector<4x128xf32>
    %68 = arith.select %4, %67, %15 : vector<4x128xi1>, vector<4x128xf32>
    %69 = vector.extract_strided_slice %68 {offsets = [0, 0], sizes = [1, 128], strides = [1, 1]} : vector<4x128xf32> to vector<1x128xf32>
    %70 = vector.extract_strided_slice %68 {offsets = [1, 0], sizes = [1, 128], strides = [1, 1]} : vector<4x128xf32> to vector<1x128xf32>
    %71 = arith.addf %69, %70 : vector<1x128xf32>
    %72 = vector.extract_strided_slice %68 {offsets = [2, 0], sizes = [1, 128], strides = [1, 1]} : vector<4x128xf32> to vector<1x128xf32>
    %73 = arith.addf %71, %72 : vector<1x128xf32>
    %74 = vector.extract_strided_slice %68 {offsets = [3, 0], sizes = [1, 128], strides = [1, 1]} : vector<4x128xf32> to vector<1x128xf32>
    %75 = arith.addf %73, %74 : vector<1x128xf32>
    %cst_14 = arith.constant 1.000000e+00 : f32
    %76 = vector.broadcast %cst_14 : f32 to vector<4x128xf32>
    %77 = arith.addf %68, %76 : vector<4x128xf32>
    %78 = arith.mulf %68, %77 : vector<4x128xf32>
    %cst_15 = arith.constant 2.000000e+00 : f32
    %79 = vector.broadcast %cst_15 : f32 to vector<4x128xf32>
    %80 = arith.addf %68, %79 : vector<4x128xf32>
    %81 = arith.mulf %78, %80 : vector<4x128xf32>
    %cst_16 = arith.constant 3.000000e+00 : f32
    %82 = vector.broadcast %cst_16 : f32 to vector<4x128xf32>
    %83 = arith.addf %68, %82 : vector<4x128xf32>
    %84 = arith.mulf %81, %83 : vector<4x128xf32>
    %cst_17 = arith.constant 4.000000e+00 : f32
    %85 = vector.broadcast %cst_17 : f32 to vector<4x128xf32>
    %86 = arith.addf %68, %85 : vector<4x128xf32>
    %87 = arith.mulf %84, %86 : vector<4x128xf32>
    %cst_18 = arith.constant 5.000000e+00 : f32
    %88 = vector.broadcast %cst_18 : f32 to vector<4x128xf32>
    %89 = arith.addf %68, %88 : vector<4x128xf32>
    %90 = arith.mulf %87, %89 : vector<4x128xf32>
    %cst_19 = arith.constant 6.000000e+00 : f32
    %91 = vector.broadcast %cst_19 : f32 to vector<4x128xf32>
    %92 = arith.addf %68, %91 : vector<4x128xf32>
    %93 = tpu.reciprocal %92 {approx = true} : vector<4x128xf32> -> vector<4x128xf32>
    %94 = arith.mulf %92, %93 : vector<4x128xf32>
    %cst_20 = arith.constant 2.000000e+00 : f32
    %95 = vector.broadcast %cst_20 : f32 to vector<4x128xf32>
    %96 = arith.subf %95, %94 : vector<4x128xf32>
    %97 = arith.mulf %93, %96 : vector<4x128xf32>
    %98 = arith.mulf %97, %97 : vector<4x128xf32>
    %99 = math.log %92 : vector<4x128xf32>
    %100 = math.log %90 : vector<4x128xf32>
    %101 = tpu.reciprocal %90 {approx = true} : vector<4x128xf32> -> vector<4x128xf32>
    %102 = arith.mulf %90, %101 : vector<4x128xf32>
    %cst_21 = arith.constant 2.000000e+00 : f32
    %103 = vector.broadcast %cst_21 : f32 to vector<4x128xf32>
    %104 = arith.subf %103, %102 : vector<4x128xf32>
    %105 = arith.mulf %101, %104 : vector<4x128xf32>
    %cst_22 = arith.constant 7.93650805E-4 : f32
    %106 = vector.broadcast %cst_22 : f32 to vector<4x128xf32>
    %107 = arith.mulf %98, %106 : vector<4x128xf32>
    %cst_23 = arith.constant 0.00277777785 : f32
    %108 = vector.broadcast %cst_23 : f32 to vector<4x128xf32>
    %109 = arith.subf %108, %107 : vector<4x128xf32>
    %110 = arith.mulf %98, %109 : vector<4x128xf32>
    %cst_24 = arith.constant 0.0833333358 : f32
    %111 = vector.broadcast %cst_24 : f32 to vector<4x128xf32>
    %112 = arith.subf %111, %110 : vector<4x128xf32>
    %113 = arith.mulf %97, %112 : vector<4x128xf32>
    %cst_25 = arith.constant 5.000000e-01 : f32
    %114 = vector.broadcast %cst_25 : f32 to vector<4x128xf32>
    %115 = arith.subf %92, %114 : vector<4x128xf32>
    %116 = arith.mulf %115, %99 : vector<4x128xf32>
    %117 = arith.subf %116, %92 : vector<4x128xf32>
    %cst_26 = arith.constant 0.918938517 : f32
    %118 = vector.broadcast %cst_26 : f32 to vector<4x128xf32>
    %119 = arith.addf %117, %118 : vector<4x128xf32>
    %120 = arith.addf %119, %113 : vector<4x128xf32>
    %121 = arith.subf %120, %100 : vector<4x128xf32>
    %cst_27 = arith.constant 0.0039682542 : f32
    %122 = vector.broadcast %cst_27 : f32 to vector<4x128xf32>
    %123 = arith.mulf %98, %122 : vector<4x128xf32>
    %cst_28 = arith.constant 0.00833333377 : f32
    %124 = vector.broadcast %cst_28 : f32 to vector<4x128xf32>
    %125 = arith.subf %124, %123 : vector<4x128xf32>
    %126 = arith.mulf %98, %125 : vector<4x128xf32>
    %cst_29 = arith.constant 0.0833333358 : f32
    %127 = vector.broadcast %cst_29 : f32 to vector<4x128xf32>
    %128 = arith.subf %127, %126 : vector<4x128xf32>
    %129 = arith.mulf %98, %128 : vector<4x128xf32>
    %cst_30 = arith.constant 6.000000e+00 : f32
    %130 = vector.broadcast %cst_30 : f32 to vector<4x128xf32>
    %131 = arith.mulf %130, %68 : vector<4x128xf32>
    %cst_31 = arith.constant 7.500000e+01 : f32
    %132 = vector.broadcast %cst_31 : f32 to vector<4x128xf32>
    %133 = arith.addf %131, %132 : vector<4x128xf32>
    %134 = arith.mulf %133, %68 : vector<4x128xf32>
    %cst_32 = arith.constant 3.400000e+02 : f32
    %135 = vector.broadcast %cst_32 : f32 to vector<4x128xf32>
    %136 = arith.addf %134, %135 : vector<4x128xf32>
    %137 = arith.mulf %136, %68 : vector<4x128xf32>
    %cst_33 = arith.constant 6.750000e+02 : f32
    %138 = vector.broadcast %cst_33 : f32 to vector<4x128xf32>
    %139 = arith.addf %137, %138 : vector<4x128xf32>
    %140 = arith.mulf %139, %68 : vector<4x128xf32>
    %cst_34 = arith.constant 5.480000e+02 : f32
    %141 = vector.broadcast %cst_34 : f32 to vector<4x128xf32>
    %142 = arith.addf %140, %141 : vector<4x128xf32>
    %143 = arith.mulf %142, %68 : vector<4x128xf32>
    %cst_35 = arith.constant 1.200000e+02 : f32
    %144 = vector.broadcast %cst_35 : f32 to vector<4x128xf32>
    %145 = arith.addf %143, %144 : vector<4x128xf32>
    %cst_36 = arith.constant 5.000000e-01 : f32
    %146 = vector.broadcast %cst_36 : f32 to vector<4x128xf32>
    %147 = arith.mulf %146, %97 : vector<4x128xf32>
    %148 = arith.subf %99, %147 : vector<4x128xf32>
    %149 = arith.subf %148, %129 : vector<4x128xf32>
    %150 = arith.mulf %145, %105 : vector<4x128xf32>
    %151 = arith.subf %149, %150 : vector<4x128xf32>
    %cst_37 = arith.constant 1.000000e+00 : f32
    %152 = vector.broadcast %cst_37 : f32 to vector<1x128xf32>
    %153 = arith.addf %75, %152 : vector<1x128xf32>
    %154 = arith.mulf %75, %153 : vector<1x128xf32>
    %cst_38 = arith.constant 2.000000e+00 : f32
    %155 = vector.broadcast %cst_38 : f32 to vector<1x128xf32>
    %156 = arith.addf %75, %155 : vector<1x128xf32>
    %157 = arith.mulf %154, %156 : vector<1x128xf32>
    %cst_39 = arith.constant 3.000000e+00 : f32
    %158 = vector.broadcast %cst_39 : f32 to vector<1x128xf32>
    %159 = arith.addf %75, %158 : vector<1x128xf32>
    %160 = arith.mulf %157, %159 : vector<1x128xf32>
    %cst_40 = arith.constant 4.000000e+00 : f32
    %161 = vector.broadcast %cst_40 : f32 to vector<1x128xf32>
    %162 = arith.addf %75, %161 : vector<1x128xf32>
    %163 = arith.mulf %160, %162 : vector<1x128xf32>
    %cst_41 = arith.constant 5.000000e+00 : f32
    %164 = vector.broadcast %cst_41 : f32 to vector<1x128xf32>
    %165 = arith.addf %75, %164 : vector<1x128xf32>
    %166 = arith.mulf %163, %165 : vector<1x128xf32>
    %cst_42 = arith.constant 6.000000e+00 : f32
    %167 = vector.broadcast %cst_42 : f32 to vector<1x128xf32>
    %168 = arith.addf %75, %167 : vector<1x128xf32>
    %169 = tpu.reciprocal %168 {approx = true} : vector<1x128xf32> -> vector<1x128xf32>
    %170 = arith.mulf %168, %169 : vector<1x128xf32>
    %cst_43 = arith.constant 2.000000e+00 : f32
    %171 = vector.broadcast %cst_43 : f32 to vector<1x128xf32>
    %172 = arith.subf %171, %170 : vector<1x128xf32>
    %173 = arith.mulf %169, %172 : vector<1x128xf32>
    %174 = arith.mulf %173, %173 : vector<1x128xf32>
    %175 = math.log %168 : vector<1x128xf32>
    %176 = math.log %166 : vector<1x128xf32>
    %177 = tpu.reciprocal %166 {approx = true} : vector<1x128xf32> -> vector<1x128xf32>
    %178 = arith.mulf %166, %177 : vector<1x128xf32>
    %cst_44 = arith.constant 2.000000e+00 : f32
    %179 = vector.broadcast %cst_44 : f32 to vector<1x128xf32>
    %180 = arith.subf %179, %178 : vector<1x128xf32>
    %181 = arith.mulf %177, %180 : vector<1x128xf32>
    %cst_45 = arith.constant 7.93650805E-4 : f32
    %182 = vector.broadcast %cst_45 : f32 to vector<1x128xf32>
    %183 = arith.mulf %174, %182 : vector<1x128xf32>
    %cst_46 = arith.constant 0.00277777785 : f32
    %184 = vector.broadcast %cst_46 : f32 to vector<1x128xf32>
    %185 = arith.subf %184, %183 : vector<1x128xf32>
    %186 = arith.mulf %174, %185 : vector<1x128xf32>
    %cst_47 = arith.constant 0.0833333358 : f32
    %187 = vector.broadcast %cst_47 : f32 to vector<1x128xf32>
    %188 = arith.subf %187, %186 : vector<1x128xf32>
    %189 = arith.mulf %173, %188 : vector<1x128xf32>
    %cst_48 = arith.constant 5.000000e-01 : f32
    %190 = vector.broadcast %cst_48 : f32 to vector<1x128xf32>
    %191 = arith.subf %168, %190 : vector<1x128xf32>
    %192 = arith.mulf %191, %175 : vector<1x128xf32>
    %193 = arith.subf %192, %168 : vector<1x128xf32>
    %cst_49 = arith.constant 0.918938517 : f32
    %194 = vector.broadcast %cst_49 : f32 to vector<1x128xf32>
    %195 = arith.addf %193, %194 : vector<1x128xf32>
    %196 = arith.addf %195, %189 : vector<1x128xf32>
    %197 = arith.subf %196, %176 : vector<1x128xf32>
    %cst_50 = arith.constant 0.0039682542 : f32
    %198 = vector.broadcast %cst_50 : f32 to vector<1x128xf32>
    %199 = arith.mulf %174, %198 : vector<1x128xf32>
    %cst_51 = arith.constant 0.00833333377 : f32
    %200 = vector.broadcast %cst_51 : f32 to vector<1x128xf32>
    %201 = arith.subf %200, %199 : vector<1x128xf32>
    %202 = arith.mulf %174, %201 : vector<1x128xf32>
    %cst_52 = arith.constant 0.0833333358 : f32
    %203 = vector.broadcast %cst_52 : f32 to vector<1x128xf32>
    %204 = arith.subf %203, %202 : vector<1x128xf32>
    %205 = arith.mulf %174, %204 : vector<1x128xf32>
    %cst_53 = arith.constant 6.000000e+00 : f32
    %206 = vector.broadcast %cst_53 : f32 to vector<1x128xf32>
    %207 = arith.mulf %206, %75 : vector<1x128xf32>
    %cst_54 = arith.constant 7.500000e+01 : f32
    %208 = vector.broadcast %cst_54 : f32 to vector<1x128xf32>
    %209 = arith.addf %207, %208 : vector<1x128xf32>
    %210 = arith.mulf %209, %75 : vector<1x128xf32>
    %cst_55 = arith.constant 3.400000e+02 : f32
    %211 = vector.broadcast %cst_55 : f32 to vector<1x128xf32>
    %212 = arith.addf %210, %211 : vector<1x128xf32>
    %213 = arith.mulf %212, %75 : vector<1x128xf32>
    %cst_56 = arith.constant 6.750000e+02 : f32
    %214 = vector.broadcast %cst_56 : f32 to vector<1x128xf32>
    %215 = arith.addf %213, %214 : vector<1x128xf32>
    %216 = arith.mulf %215, %75 : vector<1x128xf32>
    %cst_57 = arith.constant 5.480000e+02 : f32
    %217 = vector.broadcast %cst_57 : f32 to vector<1x128xf32>
    %218 = arith.addf %216, %217 : vector<1x128xf32>
    %219 = arith.mulf %218, %75 : vector<1x128xf32>
    %cst_58 = arith.constant 1.200000e+02 : f32
    %220 = vector.broadcast %cst_58 : f32 to vector<1x128xf32>
    %221 = arith.addf %219, %220 : vector<1x128xf32>
    %cst_59 = arith.constant 5.000000e-01 : f32
    %222 = vector.broadcast %cst_59 : f32 to vector<1x128xf32>
    %223 = arith.mulf %222, %173 : vector<1x128xf32>
    %224 = arith.subf %175, %223 : vector<1x128xf32>
    %225 = arith.subf %224, %205 : vector<1x128xf32>
    %226 = arith.mulf %221, %181 : vector<1x128xf32>
    %227 = arith.subf %225, %226 : vector<1x128xf32>
    %228 = vector.extract_strided_slice %121 {offsets = [0, 0], sizes = [1, 128], strides = [1, 1]} : vector<4x128xf32> to vector<1x128xf32>
    %229 = vector.extract_strided_slice %121 {offsets = [1, 0], sizes = [1, 128], strides = [1, 1]} : vector<4x128xf32> to vector<1x128xf32>
    %230 = arith.addf %228, %229 : vector<1x128xf32>
    %231 = vector.extract_strided_slice %121 {offsets = [2, 0], sizes = [1, 128], strides = [1, 1]} : vector<4x128xf32> to vector<1x128xf32>
    %232 = arith.addf %230, %231 : vector<1x128xf32>
    %233 = vector.extract_strided_slice %121 {offsets = [3, 0], sizes = [1, 128], strides = [1, 1]} : vector<4x128xf32> to vector<1x128xf32>
    %234 = arith.addf %232, %233 : vector<1x128xf32>
    %235 = arith.subf %197, %234 : vector<1x128xf32>
    %cst_60 = arith.constant 1.000000e+00 : f32
    %236 = vector.broadcast %cst_60 : f32 to vector<4x128xf32>
    %237 = arith.subf %68, %236 : vector<4x128xf32>
    %238 = vector.broadcast %227 : vector<1x128xf32> to vector<4x128xf32>
    %239 = arith.subf %151, %238 : vector<4x128xf32>
    %240 = arith.mulf %237, %239 : vector<4x128xf32>
    %241 = vector.extract_strided_slice %240 {offsets = [0, 0], sizes = [1, 128], strides = [1, 1]} : vector<4x128xf32> to vector<1x128xf32>
    %242 = vector.extract_strided_slice %240 {offsets = [1, 0], sizes = [1, 128], strides = [1, 1]} : vector<4x128xf32> to vector<1x128xf32>
    %243 = arith.addf %241, %242 : vector<1x128xf32>
    %244 = vector.extract_strided_slice %240 {offsets = [2, 0], sizes = [1, 128], strides = [1, 1]} : vector<4x128xf32> to vector<1x128xf32>
    %245 = arith.addf %243, %244 : vector<1x128xf32>
    %246 = vector.extract_strided_slice %240 {offsets = [3, 0], sizes = [1, 128], strides = [1, 1]} : vector<4x128xf32> to vector<1x128xf32>
    %247 = arith.addf %245, %246 : vector<1x128xf32>
    %248 = arith.addf %247, %235 : vector<1x128xf32>
    %cst_61 = arith.constant -1.79175949 : f32
    %249 = vector.broadcast %cst_61 : f32 to vector<1x128xf32>
    %250 = arith.addf %248, %249 : vector<1x128xf32>
    %c0_62 = arith.constant 0 : index
    %251 = memref.load %arg1[%c0_62] : memref<1xf32, #tpu.memory_space<smem>>
    %252 = vector.broadcast %251 : f32 to vector<1x128xf32>
    %253 = arith.mulf %252, %250 : vector<1x128xf32>
    %254 = arith.addf %66, %253 : vector<1x128xf32>
    %c0_63 = arith.constant 0 : index
    %c0_64 = arith.constant 0 : index
    %255 = vector.load %arg4[%c0_63, %c0_64] : memref<1x128xf32, #tpu.memory_space<vmem>>, vector<1x128xf32>
    tpu.vector_store %arg4[%c0_63, %c0_64], %254 {strides = array<i32>} : memref<1x128xf32, #tpu.memory_space<vmem>>, vector<1x128xf32>,
    %c0_65 = arith.constant 0 : index
    %c0_66 = arith.constant 0 : index
    %256 = vector.load %arg5[%c0_65, %c0_66] : memref<4x128xf32, #tpu.memory_space<vmem>>, vector<4x128xf32>
    tpu.vector_store %arg5[%c0_65, %c0_66], %13 {strides = array<i32>} : memref<4x128xf32, #tpu.memory_space<vmem>>, vector<4x128xf32>,
    %c0_67 = arith.constant 0 : index
    %c0_68 = arith.constant 0 : index
    %257 = vector.load %arg6[%c0_67, %c0_68] : memref<1x128xf32, #tpu.memory_space<vmem>>, vector<1x128xf32>
    tpu.vector_store %arg6[%c0_67, %c0_68], %29 {strides = array<i32>} : memref<1x128xf32, #tpu.memory_space<vmem>>, vector<1x128xf32>,
    %c0_69 = arith.constant 0 : index
    %c0_70 = arith.constant 0 : index
    %258 = vector.load %arg7[%c0_69, %c0_70] : memref<4x128xf32, #tpu.memory_space<vmem>>, vector<4x128xf32>
    tpu.vector_store %arg7[%c0_69, %c0_70], %31 {strides = array<i32>} : memref<4x128xf32, #tpu.memory_space<vmem>>, vector<4x128xf32>,
    return
  }
  func.func @transform_0(%arg0: i32) -> i32 {
    %c0_i32 = arith.constant 0 : i32
    %c0_i32_0 = arith.constant 0 : i32
    return %c0_i32 : i32
  }
  func.func @transform_1(%arg0: i32) -> (i32, i32) {
    %c0_i32 = arith.constant 0 : i32
    %c0_i32_0 = arith.constant 0 : i32
    return %c0_i32, %arg0 : i32, i32
  }
  func.func @transform_2(%arg0: i32) -> (i32, i32) {
    %c0_i32 = arith.constant 0 : i32
    %c0_i32_0 = arith.constant 0 : i32
    return %c0_i32, %arg0 : i32, i32
  }
  func.func @transform_3(%arg0: i32) -> (i32, i32) {
    %c0_i32 = arith.constant 0 : i32
    %c0_i32_0 = arith.constant 0 : i32
    return %c0_i32, %arg0 : i32, i32
  }
  func.func @transform_4(%arg0: i32) -> (i32, i32) {
    %c0_i32 = arith.constant 0 : i32
    %c0_i32_0 = arith.constant 0 : i32
    return %c0_i32, %arg0 : i32, i32
  }
  func.func @transform_5(%arg0: i32) -> (i32, i32) {
    %c0_i32 = arith.constant 0 : i32
    %c0_i32_0 = arith.constant 0 : i32
    return %c0_i32, %arg0 : i32, i32
  }
  func.func @transform_6(%arg0: i32) -> (i32, i32) {
    %c0_i32 = arith.constant 0 : i32
    %c0_i32_0 = arith.constant 0 : i32
    return %c0_i32, %arg0 : i32, i32
  }
}

</mosaic_0001>

<llo_original>
// kernel: _edl_loss_impl.1
$region0: #{_edl_loss_impl.1}
  #allocation0 [shape = 'u32[]', space=smem, size = 0x4, offset = 0x4, fixed_abs, tag = 'smem constant byte address 0x4 - core index']
  #allocation1 [shape = 'u32[144,128]{1,0:T(1,128)}', space=vmem, size = 0x12000, scoped, tag = 'internal scratch']
  #allocation2 [shape = 'f32[1]{0:T(128)S(6)}', space=smem, size = 0x200, scoped, tag = 'scoped memory for _edl_loss_impl.1']
  %s0 = inlined_call_operand.<no memory space> [shape: f32[1], index: 0, kind: input, shape index: {}]
  %s1 = inlined_call_operand.vmem [shape: s32[1,64], index: 1, kind: input, shape index: {}]
  %s2 = inlined_call_operand.vmem [shape: f32[4,64], index: 2, kind: input, shape index: {}]
  %s3 = inlined_call_operand.hbm [shape: f32[1,64], index: 3, kind: output, shape index: {0}]
  %s4 = inlined_call_operand.hbm [shape: f32[4,64], index: 4, kind: output, shape index: {1}]
  %s5 = inlined_call_operand.hbm [shape: f32[1,64], index: 5, kind: output, shape index: {2}]
  %s6 = inlined_call_operand.hbm [shape: f32[4,64], index: 6, kind: output, shape index: {3}]
  %7 = xla_tuple %s3, %s4, %s5, %s6
  %s8 = sld [smem:[#allocation0]]
  $region46: #{_edl_loss_impl.1} parent=0
    _
  %s10 = ssub.s32 1, %s8
  %s11 = scalar_select 0, %s10, %s8
  %12 = sst [smem:[#allocation2]] %s0
  $region1: #{_edl_loss_impl.1} parent=0
    #allocation3 [shape = 'u8[512]{0}', space=vmem, size = 0x400, scoped, tag = 'output window, operand 0, single buffered']
    #allocation4 [shape = 's32[1]{0}', space=sflag, size = 0x4, scoped, tag = 'scoped memory for _edl_loss_impl.1']
    #allocation5 [shape = 'u8[2048]{0}', space=vmem, size = 0x800, scoped, tag = 'output window, operand 1, single buffered']
    #allocation6 [shape = 's32[1]{0}', space=sflag, size = 0x4, scoped, tag = 'scoped memory for _edl_loss_impl.1']
    #allocation7 [shape = 'u8[512]{0}', space=vmem, size = 0x400, scoped, tag = 'output window, operand 2, single buffered']
    #allocation8 [shape = 'u8[2048]{0}', space=vmem, size = 0x800, scoped, tag = 'output window, operand 3, single buffered']
    #allocation9 [shape = 's32[1]{0}', space=sflag, size = 0x4, scoped, tag = 'scoped memory for _edl_loss_impl.1']
    %13 = vsyncpa [#allocation4], 0
    %14 = vsyncpa [#allocation6], 0
    %15 = vsyncpa [#allocation9], 0
    // Predicated region
    $region2: #{_edl_loss_impl.1} parent=1 // pred_check
      _
    $region3: #{_edl_loss_impl.1} parent=1 // pred_check_branch
      %17 = sbr.rel (0) target = $region5
    $region4: #{_edl_loss_impl.1} parent=1 // pred_region
      _
    $region5: #{_edl_loss_impl.1} parent=1 // pred_fallthru
      _
    // Predicated region
    $region6: #{_edl_loss_impl.1} parent=1 // pred_check
      _
    $region7: #{_edl_loss_impl.1} parent=1 // pred_check_branch
      %19 = sbr.rel (0) target = $region9
    $region8: #{_edl_loss_impl.1} parent=1 // pred_region
      _
    $region9: #{_edl_loss_impl.1} parent=1 // pred_fallthru
      _
    // Predicated region
    $region10: #{_edl_loss_impl.1} parent=1 // pred_check
      _
    $region11: #{_edl_loss_impl.1} parent=1 // pred_check_branch
      %21 = sbr.rel (0) target = $region13
    $region12: #{_edl_loss_impl.1} parent=1 // pred_region
      _
    $region13: #{_edl_loss_impl.1} parent=1 // pred_fallthru
      _
    %v22 = vld [vmem:[%s2] sm:$0xf]
    %v23 = vld [vmem:[%s1] sm:$0x1]
    %v24 = vlaneseq
    %v25 = vshrl.u32 %v24, 7
    %v26 = vlaneseq
    %v27 = vshrl.u32 %v26, 7
    %v28 = vsub.s32 0, %v27
    %v29 = vrot.slane %v23, %v28
    %vm30 = vcmp.eq.s32.totalorder %v25, %v29
    %v31 = vsel %vm30, 1, 0
    %v32 = vcvt.s32.f32 %v31
    %v33 = vmul.f32 %v22, 0.1
    %v34 = vmax.f32 %v33, -10.0
    %v35 = vmin.f32 %v34, 10.0
    %v36 = vmul.f32 %v35, 1.442695
    %v37 = vpow.pop %v36
    %v38 = vadd.f32 %v37, 1.0
    %v40 = vrot.slane %v38, 1
    %v42 = vadd.f32 %v38, %v40
    %v43 = vrot.slane %v38, 2
    %v45 = vadd.f32 %v42, %v43
    %v46 = vrot.slane %v38, 3
    %v48 = vadd.f32 %v45, %v46
    %v49 = vrcp.pop %v48
    %v50 = vmul.f32 %v48, %v49
    %v51 = vsub.f32 2.0, %v50
    %v52 = vmul.f32 %v49, %v51
    %v53 = vmul.f32 %v52, 4.0
    %v54 = vlaneseq
    %v55 = vshrl.u32 %v54, 7
    %v56 = vsub.s32 0, %v55
    %v57 = vrot.slane %v52, %v56
    %v58 = vmul.f32 %v38, %v57
    %v59 = vmul.f32 %v38, %v38
    %v61 = vrot.slane %v59, 1
    %v63 = vadd.f32 %v59, %v61
    %v64 = vrot.slane %v59, 2
    %v66 = vadd.f32 %v63, %v64
    %v67 = vrot.slane %v59, 3
    %v69 = vadd.f32 %v66, %v67
    %v70 = vmul.f32 %v32, %v38
    %v72 = vrot.slane %v70, 1
    %v74 = vadd.f32 %v70, %v72
    %v75 = vrot.slane %v70, 2
    %v77 = vadd.f32 %v74, %v75
    %v78 = vrot.slane %v70, 3
    %v80 = vadd.f32 %v77, %v78
    %v81 = vmul.f32 %v52, %v52
    %v82 = vmul.f32 %v69, %v81
    %v83 = vmul.f32 %v80, 2.0
    %v84 = vmul.f32 %v83, %v52
    %v85 = vsub.f32 1.0, %v84
    %v86 = vadd.f32 %v85, %v82
    %v87 = vsub.f32 1.0, %v82
    %v88 = vadd.f32 %v48, 1.0
    %v89 = vrcp.pop %v88
    %v90 = vmul.f32 %v88, %v89
    %v91 = vsub.f32 2.0, %v90
    %v92 = vmul.f32 %v89, %v91
    %v93 = vmul.f32 %v87, %v92
    %v94 = vadd.f32 %v86, %v93
    %v95 = vsel %vm30, 1.0, %v38
    %v97 = vrot.slane %v95, 1
    %v99 = vadd.f32 %v95, %v97
    %v100 = vrot.slane %v95, 2
    %v102 = vadd.f32 %v99, %v100
    %v103 = vrot.slane %v95, 3
    %v105 = vadd.f32 %v102, %v103
    %v106 = vadd.f32 %v95, 1.0
    %v107 = vmul.f32 %v95, %v106
    %v108 = vadd.f32 %v95, 2.0
    %v109 = vmul.f32 %v107, %v108
    %v110 = vadd.f32 %v95, 3.0
    %v111 = vmul.f32 %v109, %v110
    %v112 = vadd.f32 %v95, 4.0
    %v113 = vmul.f32 %v111, %v112
    %v114 = vadd.f32 %v95, 5.0
    %v115 = vmul.f32 %v113, %v114
    %v116 = vadd.f32 %v95, 6.0
    %v117 = vrcp.pop %v116
    %v118 = vmul.f32 %v116, %v117
    %v119 = vsub.f32 2.0, %v118
    %v120 = vmul.f32 %v117, %v119
    %v121 = vmul.f32 %v120, %v120
    %v122 = vlog2.pop %v116
    %v123 = vmul.f32 %v122, 0.6931472
    %v124 = vlog2.pop %v115
    %v125 = vmul.f32 %v124, 0.6931472
    %v126 = vrcp.pop %v115
    %v127 = vmul.f32 %v115, %v126
    %v128 = vsub.f32 2.0, %v127
    %v129 = vmul.f32 %v126, %v128
    %v130 = vmul.f32 %v121, 0.0007936508
    %v131 = vsub.f32 0.0027777778, %v130
    %v132 = vmul.f32 %v121, %v131
    %v133 = vsub.f32 0.083333336, %v132
    %v134 = vmul.f32 %v120, %v133
    %v135 = vsub.f32 %v116, 0.5
    %v136 = vmul.f32 %v135, %v123
    %v137 = vsub.f32 %v136, %v116
    %v138 = vadd.f32 %v137, 0.9189385
    %v139 = vadd.f32 %v138, %v134
    %v140 = vsub.f32 %v139, %v125
    %v141 = vmul.f32 %v121, 0.003968254
    %v142 = vsub.f32 0.008333334, %v141
    %v143 = vmul.f32 %v121, %v142
    %v144 = vsub.f32 0.083333336, %v143
    %v145 = vmul.f32 %v121, %v144
    %v146 = vmul.f32 %v95, 6.0
    %v147 = vadd.f32 %v146, 75.0
    %v148 = vmul.f32 %v147, %v95
    %v149 = vadd.f32 %v148, 340.0
    %v150 = vmul.f32 %v149, %v95
    %v151 = vadd.f32 %v150, 675.0
    %v152 = vmul.f32 %v151, %v95
    %v153 = vadd.f32 %v152, 548.0
    %v154 = vmul.f32 %v153, %v95
    %v155 = vadd.f32 %v154, 120.0
    %v156 = vmul.f32 %v120, 0.5
    %v157 = vsub.f32 %v123, %v156
    %v158 = vsub.f32 %v157, %v145
    %v159 = vmul.f32 %v155, %v129
    %v160 = vsub.f32 %v158, %v159
    %v161 = vadd.f32 %v105, 1.0
    %v162 = vmul.f32 %v105, %v161
    %v163 = vadd.f32 %v105, 2.0
    %v164 = vmul.f32 %v162, %v163
    %v165 = vadd.f32 %v105, 3.0
    %v166 = vmul.f32 %v164, %v165
    %v167 = vadd.f32 %v105, 4.0
    %v168 = vmul.f32 %v166, %v167
    %v169 = vadd.f32 %v105, 5.0
    %v170 = vmul.f32 %v168, %v169
    %v171 = vadd.f32 %v105, 6.0
    %v172 = vrcp.pop %v171
    %v173 = vmul.f32 %v171, %v172
    %v174 = vsub.f32 2.0, %v173
    %v175 = vmul.f32 %v172, %v174
    %v176 = vmul.f32 %v175, %v175
    %v177 = vlog2.pop %v171
    %v178 = vmul.f32 %v177, 0.6931472
    %v179 = vlog2.pop %v170
    %v180 = vmul.f32 %v179, 0.6931472
    %v181 = vrcp.pop %v170
    %v182 = vmul.f32 %v170, %v181
    %v183 = vsub.f32 2.0, %v182
    %v184 = vmul.f32 %v181, %v183
    %v185 = vmul.f32 %v176, 0.0007936508
    %v186 = vsub.f32 0.0027777778, %v185
    %v187 = vmul.f32 %v176, %v186
    %v188 = vsub.f32 0.083333336, %v187
    %v189 = vmul.f32 %v175, %v188
    %v190 = vsub.f32 %v171, 0.5
    %v191 = vmul.f32 %v190, %v178
    %v192 = vsub.f32 %v191, %v171
    %v193 = vadd.f32 %v192, 0.9189385
    %v194 = vadd.f32 %v193, %v189
    %v195 = vsub.f32 %v194, %v180
    %v196 = vmul.f32 %v176, 0.003968254
    %v197 = vsub.f32 0.008333334, %v196
    %v198 = vmul.f32 %v176, %v197
    %v199 = vsub.f32 0.083333336, %v198
    %v200 = vmul.f32 %v176, %v199
    %v201 = vmul.f32 %v105, 6.0
    %v202 = vadd.f32 %v201, 75.0
    %v203 = vmul.f32 %v202, %v105
    %v204 = vadd.f32 %v203, 340.0
    %v205 = vmul.f32 %v204, %v105
    %v206 = vadd.f32 %v205, 675.0
    %v207 = vmul.f32 %v206, %v105
    %v208 = vadd.f32 %v207, 548.0
    %v209 = vmul.f32 %v208, %v105
    %v210 = vadd.f32 %v209, 120.0
    %v211 = vmul.f32 %v175, 0.5
    %v212 = vsub.f32 %v178, %v211
    %v213 = vsub.f32 %v212, %v200
    %v214 = vmul.f32 %v210, %v184
    %v215 = vsub.f32 %v213, %v214
    %v217 = vrot.slane %v140, 1
    %v219 = vadd.f32 %v140, %v217
    %v220 = vrot.slane %v140, 2
    %v222 = vadd.f32 %v219, %v220
    %v223 = vrot.slane %v140, 3
    %v225 = vadd.f32 %v222, %v223
    %v226 = vsub.f32 %v195, %v225
    %v227 = vsub.f32 %v95, 1.0
    %v228 = vlaneseq
    %v229 = vshrl.u32 %v228, 7
    %v230 = vsub.s32 0, %v229
    %v231 = vrot.slane %v215, %v230
    %v232 = vsub.f32 %v160, %v231
    %v233 = vmul.f32 %v227, %v232
    %v235 = vrot.slane %v233, 1
    %v237 = vadd.f32 %v233, %v235
    %v238 = vrot.slane %v233, 2
    %v240 = vadd.f32 %v237, %v238
    %v241 = vrot.slane %v233, 3
    %v243 = vadd.f32 %v240, %v241
    %v244 = vadd.f32 %v243, %v226
    %v245 = vadd.f32 %v244, -1.7917595
    %s246 = sld [smem:[#allocation2]]
    %v247 = vstv %s246
    %v248 = vmul.f32 %v247, %v245
    %v249 = vadd.f32 %v94, %v248
    %250 = vst [vmem:[#allocation3] sm:$0x1] %v249
    %251 = vst [vmem:[#allocation5] sm:$0xf] %v37
    %252 = vst [vmem:[#allocation7] sm:$0x1] %v53
    %253 = vst [vmem:[#allocation8] sm:$0xf] %v58
    // Predicated region
    $region14: #{_edl_loss_impl.1} parent=1 // pred_check
      _
    $region15: #{_edl_loss_impl.1} parent=1 // pred_check_branch
      %255 = sbr.rel (0) target = $region17
    $region16: #{_edl_loss_impl.1} parent=1 // pred_region
      %s257 = ssub.s32 16, 16
      %258 = vsyncadd [#allocation4], %s257
      %s260 = sshll.u32 [#allocation3], 4
      %s261 = int_to_ptr.vmem [resolvable:$true] %s260
      %263 = dma.vmem_to_hbm [thread:$0]  %s261, 16, %s3, [#allocation4]
    $region17: #{_edl_loss_impl.1} parent=1 // pred_fallthru
      _
    // Predicated region
    $region18: #{_edl_loss_impl.1} parent=1 // pred_check
      _
    $region19: #{_edl_loss_impl.1} parent=1 // pred_check_branch
      %265 = sbr.rel (0) target = $region21
    $region20: #{_edl_loss_impl.1} parent=1 // pred_region
      %s267 = ssub.s32 64, 64
      %268 = vsyncadd [#allocation6], %s267
      %s270 = sshll.u32 [#allocation5], 4
      %s271 = int_to_ptr.vmem [resolvable:$true] %s270
      %273 = dma.vmem_to_hbm [thread:$0]  %s271, 64, %s4, [#allocation6]
    $region21: #{_edl_loss_impl.1} parent=1 // pred_fallthru
      _
    // Predicated region
    $region22: #{_edl_loss_impl.1} parent=1 // pred_check
      _
    $region23: #{_edl_loss_impl.1} parent=1 // pred_check_branch
      %275 = sbr.rel (0) target = $region25
    $region24: #{_edl_loss_impl.1} parent=1 // pred_region
      %s277 = ssub.s32 16, 16
      %278 = vsyncadd [#allocation6], %s277
      %s280 = sshll.u32 [#allocation7], 4
      %s281 = int_to_ptr.vmem [resolvable:$true] %s280
      %283 = dma.vmem_to_hbm [thread:$0]  %s281, 16, %s5, [#allocation6]
    $region25: #{_edl_loss_impl.1} parent=1 // pred_fallthru
      _
    // Predicated region
    $region26: #{_edl_loss_impl.1} parent=1 // pred_check
      _
    $region27: #{_edl_loss_impl.1} parent=1 // pred_check_branch
      %285 = sbr.rel (0) target = $region29
    $region28: #{_edl_loss_impl.1} parent=1 // pred_region
      %s287 = ssub.s32 64, 64
      %288 = vsyncadd [#allocation9], %s287
      %s290 = sshll.u32 [#allocation8], 4
      %s291 = int_to_ptr.vmem [resolvable:$true] %s290
      %293 = dma.vmem_to_hbm [thread:$0]  %s291, 64, %s6, [#allocation9]
    $region29: #{_edl_loss_impl.1} parent=1 // pred_fallthru
      _
    // Predicated region
    $region30: #{_edl_loss_impl.1} parent=1 // pred_check
      _
    $region31: #{_edl_loss_impl.1} parent=1 // pred_check_branch
      %295 = sbr.rel (0) target = $region33
    $region32: #{_edl_loss_impl.1} parent=1 // pred_region
      %296 = dma.done [#allocation4], 16
    $region33: #{_edl_loss_impl.1} parent=1 // pred_fallthru
      _
    // Predicated region
    $region34: #{_edl_loss_impl.1} parent=1 // pred_check
      _
    $region35: #{_edl_loss_impl.1} parent=1 // pred_check_branch
      %298 = sbr.rel (0) target = $region37
    $region36: #{_edl_loss_impl.1} parent=1 // pred_region
      %299 = dma.done [#allocation6], 64
    $region37: #{_edl_loss_impl.1} parent=1 // pred_fallthru
      _
    // Predicated region
    $region38: #{_edl_loss_impl.1} parent=1 // pred_check
      _
    $region39: #{_edl_loss_impl.1} parent=1 // pred_check_branch
      %301 = sbr.rel (0) target = $region41
    $region40: #{_edl_loss_impl.1} parent=1 // pred_region
      %302 = dma.done [#allocation6], 16
    $region41: #{_edl_loss_impl.1} parent=1 // pred_fallthru
      _
    // Predicated region
    $region42: #{_edl_loss_impl.1} parent=1 // pred_check
      _
    $region43: #{_edl_loss_impl.1} parent=1 // pred_check_branch
      %304 = sbr.rel (0) target = $region45
    $region44: #{_edl_loss_impl.1} parent=1 // pred_region
      %305 = dma.done [#allocation9], 64
    $region45: #{_edl_loss_impl.1} parent=1 // pred_fallthru
      _
    %306 = vsyncpa [#allocation4], 1
    %307 = vsyncpa [#allocation6], 1
    %308 = vsyncpa [#allocation9], 1

</llo_original>
